<compile_context>
chip_gen: v7x
topology: tpu7x:2x2x1
jax: 0.10.0
libtpu: 0.0.40
codegen_flags: <defaults>
</compile_context>

<pallas_src>
import functools

import jax
import jax.numpy as jnp
from jax.experimental import pallas as pl
from jax.experimental.pallas import tpu as pltpu

LANE = 128        # vreg lane width: batch % 128 maps here
SUBLANE = 8       # vreg sublane count: batch // 128 rows are padded to x8
MAX_TILE_R = 2048  # max rows (of 128 lanes) per grid step -> 256K samples/step
SPLIT_R = 1024     # if a single tile would hold >= this many rows, use 2 steps


def mlp_kernel(x_ref, w1_ref, b1_ref, w2_ref, b2_ref, w3_ref, b3_ref, o_ref):
    """x_ref: (4, TR, 128) VMEM tile; o_ref: (3, TR, 128) VMEM tile.
    w*_ref/b*_ref: small f32 arrays resident in SMEM, read as scalars."""
    rows = [x_ref[i] for i in range(4)]            # dense (TR, 128) slabs

    def layer(in_rows, w_ref, b_ref, fan_in, fan_out):
        outs = []
        for o in range(fan_out):
            acc = in_rows[0] * w_ref[0, o] + b_ref[o]   # scalar*vector (VPU)
            for i in range(1, fan_in):
                acc = acc + in_rows[i] * w_ref[i, o]
            outs.append(jnp.tanh(acc))                  # tanh -> EUP
        return outs

    h = layer(rows, w1_ref, b1_ref, 4, 3)
    h = layer(h, w2_ref, b2_ref, 3, 3)
    h = layer(h, w3_ref, b3_ref, 3, 3)
    for o in range(3):                             # direct lane-dense row stores
        o_ref[o] = h[o].astype(o_ref.dtype)


def net_forward_feature_major(xt, params, tr):
    """xt: (4, R, 128) f32 slab with R % tr == 0 and tr % 8 == 0.
    Returns (3, R, 128) f32.  Use this entry point when the producer can
    supply feature-major data directly (no wrapper transpose pass)."""
    w1, b1, w2, b2, w3, b3 = params
    r_pad = xt.shape[1]
    n_steps = r_pad // tr
    lanes = r_pad * LANE
    smem = pl.BlockSpec(memory_space=pltpu.MemorySpace.SMEM)

    return pl.pallas_call(
        mlp_kernel,
        out_shape=jax.ShapeDtypeStruct((3, r_pad, LANE), jnp.float32),
        grid=(n_steps,),
        in_specs=[
            pl.BlockSpec((4, tr, LANE), lambda i: (0, i, 0)),  # pipelined batch tile
            smem, smem,                                        # w1, b1
            smem, smem,                                        # w2, b2
            smem, smem,                                        # w3, b3
        ],
        out_specs=pl.BlockSpec((3, tr, LANE), lambda i: (0, i, 0)),
        compiler_params=pltpu.CompilerParams(
            dimension_semantics=("parallel",),
            vmem_limit_bytes=32 * 1024 * 1024),
        cost_estimate=pl.CostEstimate(
            flops=2 * lanes * (4 * 3 + 3 * 3 + 3 * 3),
            transcendentals=9 * lanes,
            bytes_accessed=lanes * (4 + 3) * 4),
    )(xt, w1, b1, w2, b2, w3, b3)


def _tiling(batch):
    """Pick (tile_rows, padded_rows) for a batch of `batch` samples."""
    r_total = max(1, -(-batch // LANE))
    n_steps = -(-r_total // MAX_TILE_R)
    if n_steps == 1 and r_total >= SPLIT_R:
        n_steps = 2                       # >=2 grid steps so v7x's 2 TCs share work
    tr = -(-r_total // n_steps)
    tr = -(-tr // SUBLANE) * SUBLANE      # sublane-aligned tile
    r_pad = n_steps * tr                  # pad waste bounded by ~n_steps*8 rows
    return tr, r_pad


@functools.partial(jax.jit, static_argnames=("tile_r",))
def net_forward(x, params, *, tile_r=None):
    """x: (B, 4) batch-major (PyTorch convention). Returns (B, 3)."""
    B = x.shape[0]
    if tile_r is not None:
        tr = max(SUBLANE, -(-tile_r // SUBLANE) * SUBLANE)
        r_total = max(1, -(-B // LANE))
        r_pad = -(-r_total // tr) * tr
    else:
        tr, r_pad = _tiling(B)
    b_pad = r_pad * LANE

    # One pad+transpose pass -> (4, R, 128) feature-major slab.  Padded lanes
    # are zeros; they flow through tanh(bias) (bounded) and are sliced off.
    xt = jnp.pad(x, ((0, b_pad - B), (0, 0))).T.reshape(4, r_pad, LANE)
    out = net_forward_feature_major(xt, params, tr)       # (3, R, 128)
    return out.reshape(3, b_pad)[:, :B].T                 # back to (B, 3)


def init_params(key):
    # Mimics nn.Linear init: uniform(-1/sqrt(fan_in), 1/sqrt(fan_in)).
    # Weights stored transposed as (in, out): y = x @ W + b == PyTorch x @ W_pt.T + b.
    ks = jax.random.split(key, 6)

    def linear(kw, kb, fan_in, fan_out):
        bound = 1.0 / jnp.sqrt(jnp.float32(fan_in))
        w = jax.random.uniform(kw, (fan_in, fan_out), jnp.float32, -bound, bound)
        b = jax.random.uniform(kb, (fan_out,), jnp.float32, -bound, bound)
        return w, b

    w1, b1 = linear(ks[0], ks[1], 4, 3)
    w2, b2 = linear(ks[2], ks[3], 3, 3)
    w3, b3 = linear(ks[4], ks[5], 3, 3)
    return (w1, b1, w2, b2, w3, b3)


def reference_forward(x, params):
    w1, b1, w2, b2, w3, b3 = params
    h = jnp.tanh(x @ w1 + b1)
    h = jnp.tanh(h @ w2 + b2)
    h = jnp.tanh(h @ w3 + b3)
    return h


if __name__ == "__main__":
    key = jax.random.PRNGKey(0)
    k_params, k_x1, k_x2 = jax.random.split(key, 3)
    params = init_params(k_params)

    # Small Iris-like batch (module input is (B, 4)) -> single (4, 8, 128) tile.
    x_small = jax.random.normal(k_x1, (8, 4), jnp.float32)
    out_small = jax.block_until_ready(net_forward(x_small, params))
    ref_small = reference_forward(x_small, params)
    assert out_small.shape == (8, 3)
    assert jnp.allclose(out_small, ref_small, atol=1e-5, rtol=1e-5)

    # Non-128-multiple batch with a forced small tile -> multi-step "parallel"
    # grid (cheap coverage of the pipelined / megacore-sharded path).
    x_big = jax.random.normal(k_x2, (1500, 4), jnp.float32)
    out_tiled = jax.block_until_ready(net_forward(x_big, params, tile_r=8))
    ref_big = reference_forward(x_big, params)
    assert out_tiled.shape == (1500, 3)
    assert jnp.allclose(out_tiled, ref_big, atol=1e-5, rtol=1e-5)

    # Same batch with default adaptive tiling (single dense tile).
    out_auto = jax.block_until_ready(net_forward(x_big, params))
    assert jnp.allclose(out_auto, ref_big, atol=1e-5, rtol=1e-5)

    print("KERNEL_OK")
</pallas_src>

<mosaic_0001>
module attributes {stable_mosaic.version = 11 : i64} {
  func.func @mlp_kernel(%arg0: i32, %arg1: memref<4x8x128xf32, #tpu.memory_space<vmem>>, %arg2: memref<4x3xf32, #tpu.memory_space<smem>>, %arg3: memref<3xf32, #tpu.memory_space<smem>>, %arg4: memref<3x3xf32, #tpu.memory_space<smem>>, %arg5: memref<3xf32, #tpu.memory_space<smem>>, %arg6: memref<3x3xf32, #tpu.memory_space<smem>>, %arg7: memref<3xf32, #tpu.memory_space<smem>>, %arg8: memref<3x8x128xf32, #tpu.memory_space<vmem>>) attributes {dimension_semantics = [#tpu.dimension_semantics<parallel>], iteration_bounds = array<i64: 1>, scalar_prefetch = 0 : i64, scratch_operands = 0 : i64, tpu.core_type = #tpu.core_type<tc>, window_params = [{transform_indices = @transform_0, window_bounds = array<i64: 4, 8, 128>}, {transform_indices = @transform_1, window_bounds = array<i64: 4, 3>}, {transform_indices = @transform_2, window_bounds = array<i64: 3>}, {transform_indices = @transform_3, window_bounds = array<i64: 3, 3>}, {transform_indices = @transform_4, window_bounds = array<i64: 3>}, {transform_indices = @transform_5, window_bounds = array<i64: 3, 3>}, {transform_indices = @transform_6, window_bounds = array<i64: 3>}, {transform_indices = @transform_7, window_bounds = array<i64: 3, 8, 128>}]} {
    %c0 = arith.constant 0 : index
    %c0_0 = arith.constant 0 : index
    %c0_1 = arith.constant 0 : index
    %0 = vector.load %arg1[%c0, %c0_0, %c0_1] : memref<4x8x128xf32, #tpu.memory_space<vmem>>, vector<1x8x128xf32>
    %1 = vector.shape_cast %0 : vector<1x8x128xf32> to vector<8x128xf32>
    %c1 = arith.constant 1 : index
    %c0_2 = arith.constant 0 : index
    %c0_3 = arith.constant 0 : index
    %2 = vector.load %arg1[%c1, %c0_2, %c0_3] : memref<4x8x128xf32, #tpu.memory_space<vmem>>, vector<1x8x128xf32>
    %3 = vector.shape_cast %2 : vector<1x8x128xf32> to vector<8x128xf32>
    %c2 = arith.constant 2 : index
    %c0_4 = arith.constant 0 : index
    %c0_5 = arith.constant 0 : index
    %4 = vector.load %arg1[%c2, %c0_4, %c0_5] : memref<4x8x128xf32, #tpu.memory_space<vmem>>, vector<1x8x128xf32>
    %5 = vector.shape_cast %4 : vector<1x8x128xf32> to vector<8x128xf32>
    %c3 = arith.constant 3 : index
    %c0_6 = arith.constant 0 : index
    %c0_7 = arith.constant 0 : index
    %6 = vector.load %arg1[%c3, %c0_6, %c0_7] : memref<4x8x128xf32, #tpu.memory_space<vmem>>, vector<1x8x128xf32>
    %7 = vector.shape_cast %6 : vector<1x8x128xf32> to vector<8x128xf32>
    %c0_8 = arith.constant 0 : index
    %c0_9 = arith.constant 0 : index
    %8 = memref.load %arg2[%c0_8, %c0_9] : memref<4x3xf32, #tpu.memory_space<smem>>
    %9 = vector.broadcast %8 : f32 to vector<8x128xf32>
    %10 = arith.mulf %1, %9 : vector<8x128xf32>
    %c0_10 = arith.constant 0 : index
    %11 = memref.load %arg3[%c0_10] : memref<3xf32, #tpu.memory_space<smem>>
    %12 = vector.broadcast %11 : f32 to vector<8x128xf32>
    %13 = arith.addf %10, %12 : vector<8x128xf32>
    %c1_11 = arith.constant 1 : index
    %c0_12 = arith.constant 0 : index
    %14 = memref.load %arg2[%c1_11, %c0_12] : memref<4x3xf32, #tpu.memory_space<smem>>
    %15 = vector.broadcast %14 : f32 to vector<8x128xf32>
    %16 = arith.mulf %3, %15 : vector<8x128xf32>
    %17 = arith.addf %13, %16 : vector<8x128xf32>
    %c2_13 = arith.constant 2 : index
    %c0_14 = arith.constant 0 : index
    %18 = memref.load %arg2[%c2_13, %c0_14] : memref<4x3xf32, #tpu.memory_space<smem>>
    %19 = vector.broadcast %18 : f32 to vector<8x128xf32>
    %20 = arith.mulf %5, %19 : vector<8x128xf32>
    %21 = arith.addf %17, %20 : vector<8x128xf32>
    %c3_15 = arith.constant 3 : index
    %c0_16 = arith.constant 0 : index
    %22 = memref.load %arg2[%c3_15, %c0_16] : memref<4x3xf32, #tpu.memory_space<smem>>
    %23 = vector.broadcast %22 : f32 to vector<8x128xf32>
    %24 = arith.mulf %7, %23 : vector<8x128xf32>
    %25 = arith.addf %21, %24 : vector<8x128xf32>
    %26 = math.tanh %25 : vector<8x128xf32>
    %c0_17 = arith.constant 0 : index
    %c1_18 = arith.constant 1 : index
    %27 = memref.load %arg2[%c0_17, %c1_18] : memref<4x3xf32, #tpu.memory_space<smem>>
    %28 = vector.broadcast %27 : f32 to vector<8x128xf32>
    %29 = arith.mulf %1, %28 : vector<8x128xf32>
    %c1_19 = arith.constant 1 : index
    %30 = memref.load %arg3[%c1_19] : memref<3xf32, #tpu.memory_space<smem>>
    %31 = vector.broadcast %30 : f32 to vector<8x128xf32>
    %32 = arith.addf %29, %31 : vector<8x128xf32>
    %c1_20 = arith.constant 1 : index
    %c1_21 = arith.constant 1 : index
    %33 = memref.load %arg2[%c1_20, %c1_21] : memref<4x3xf32, #tpu.memory_space<smem>>
    %34 = vector.broadcast %33 : f32 to vector<8x128xf32>
    %35 = arith.mulf %3, %34 : vector<8x128xf32>
    %36 = arith.addf %32, %35 : vector<8x128xf32>
    %c2_22 = arith.constant 2 : index
    %c1_23 = arith.constant 1 : index
    %37 = memref.load %arg2[%c2_22, %c1_23] : memref<4x3xf32, #tpu.memory_space<smem>>
    %38 = vector.broadcast %37 : f32 to vector<8x128xf32>
    %39 = arith.mulf %5, %38 : vector<8x128xf32>
    %40 = arith.addf %36, %39 : vector<8x128xf32>
    %c3_24 = arith.constant 3 : index
    %c1_25 = arith.constant 1 : index
    %41 = memref.load %arg2[%c3_24, %c1_25] : memref<4x3xf32, #tpu.memory_space<smem>>
    %42 = vector.broadcast %41 : f32 to vector<8x128xf32>
    %43 = arith.mulf %7, %42 : vector<8x128xf32>
    %44 = arith.addf %40, %43 : vector<8x128xf32>
    %45 = math.tanh %44 : vector<8x128xf32>
    %c0_26 = arith.constant 0 : index
    %c2_27 = arith.constant 2 : index
    %46 = memref.load %arg2[%c0_26, %c2_27] : memref<4x3xf32, #tpu.memory_space<smem>>
    %47 = vector.broadcast %46 : f32 to vector<8x128xf32>
    %48 = arith.mulf %1, %47 : vector<8x128xf32>
    %c2_28 = arith.constant 2 : index
    %49 = memref.load %arg3[%c2_28] : memref<3xf32, #tpu.memory_space<smem>>
    %50 = vector.broadcast %49 : f32 to vector<8x128xf32>
    %51 = arith.addf %48, %50 : vector<8x128xf32>
    %c1_29 = arith.constant 1 : index
    %c2_30 = arith.constant 2 : index
    %52 = memref.load %arg2[%c1_29, %c2_30] : memref<4x3xf32, #tpu.memory_space<smem>>
    %53 = vector.broadcast %52 : f32 to vector<8x128xf32>
    %54 = arith.mulf %3, %53 : vector<8x128xf32>
    %55 = arith.addf %51, %54 : vector<8x128xf32>
    %c2_31 = arith.constant 2 : index
    %c2_32 = arith.constant 2 : index
    %56 = memref.load %arg2[%c2_31, %c2_32] : memref<4x3xf32, #tpu.memory_space<smem>>
    %57 = vector.broadcast %56 : f32 to vector<8x128xf32>
    %58 = arith.mulf %5, %57 : vector<8x128xf32>
    %59 = arith.addf %55, %58 : vector<8x128xf32>
    %c3_33 = arith.constant 3 : index
    %c2_34 = arith.constant 2 : index
    %60 = memref.load %arg2[%c3_33, %c2_34] : memref<4x3xf32, #tpu.memory_space<smem>>
    %61 = vector.broadcast %60 : f32 to vector<8x128xf32>
    %62 = arith.mulf %7, %61 : vector<8x128xf32>
    %63 = arith.addf %59, %62 : vector<8x128xf32>
    %64 = math.tanh %63 : vector<8x128xf32>
    %c0_35 = arith.constant 0 : index
    %c0_36 = arith.constant 0 : index
    %65 = memref.load %arg4[%c0_35, %c0_36] : memref<3x3xf32, #tpu.memory_space<smem>>
    %66 = vector.broadcast %65 : f32 to vector<8x128xf32>
    %67 = arith.mulf %26, %66 : vector<8x128xf32>
    %c0_37 = arith.constant 0 : index
    %68 = memref.load %arg5[%c0_37] : memref<3xf32, #tpu.memory_space<smem>>
    %69 = vector.broadcast %68 : f32 to vector<8x128xf32>
    %70 = arith.addf %67, %69 : vector<8x128xf32>
    %c1_38 = arith.constant 1 : index
    %c0_39 = arith.constant 0 : index
    %71 = memref.load %arg4[%c1_38, %c0_39] : memref<3x3xf32, #tpu.memory_space<smem>>
    %72 = vector.broadcast %71 : f32 to vector<8x128xf32>
    %73 = arith.mulf %45, %72 : vector<8x128xf32>
    %74 = arith.addf %70, %73 : vector<8x128xf32>
    %c2_40 = arith.constant 2 : index
    %c0_41 = arith.constant 0 : index
    %75 = memref.load %arg4[%c2_40, %c0_41] : memref<3x3xf32, #tpu.memory_space<smem>>
    %76 = vector.broadcast %75 : f32 to vector<8x128xf32>
    %77 = arith.mulf %64, %76 : vector<8x128xf32>
    %78 = arith.addf %74, %77 : vector<8x128xf32>
    %79 = math.tanh %78 : vector<8x128xf32>
    %c0_42 = arith.constant 0 : index
    %c1_43 = arith.constant 1 : index
    %80 = memref.load %arg4[%c0_42, %c1_43] : memref<3x3xf32, #tpu.memory_space<smem>>
    %81 = vector.broadcast %80 : f32 to vector<8x128xf32>
    %82 = arith.mulf %26, %81 : vector<8x128xf32>
    %c1_44 = arith.constant 1 : index
    %83 = memref.load %arg5[%c1_44] : memref<3xf32, #tpu.memory_space<smem>>
    %84 = vector.broadcast %83 : f32 to vector<8x128xf32>
    %85 = arith.addf %82, %84 : vector<8x128xf32>
    %c1_45 = arith.constant 1 : index
    %c1_46 = arith.constant 1 : index
    %86 = memref.load %arg4[%c1_45, %c1_46] : memref<3x3xf32, #tpu.memory_space<smem>>
    %87 = vector.broadcast %86 : f32 to vector<8x128xf32>
    %88 = arith.mulf %45, %87 : vector<8x128xf32>
    %89 = arith.addf %85, %88 : vector<8x128xf32>
    %c2_47 = arith.constant 2 : index
    %c1_48 = arith.constant 1 : index
    %90 = memref.load %arg4[%c2_47, %c1_48] : memref<3x3xf32, #tpu.memory_space<smem>>
    %91 = vector.broadcast %90 : f32 to vector<8x128xf32>
    %92 = arith.mulf %64, %91 : vector<8x128xf32>
    %93 = arith.addf %89, %92 : vector<8x128xf32>
    %94 = math.tanh %93 : vector<8x128xf32>
    %c0_49 = arith.constant 0 : index
    %c2_50 = arith.constant 2 : index
    %95 = memref.load %arg4[%c0_49, %c2_50] : memref<3x3xf32, #tpu.memory_space<smem>>
    %96 = vector.broadcast %95 : f32 to vector<8x128xf32>
    %97 = arith.mulf %26, %96 : vector<8x128xf32>
    %c2_51 = arith.constant 2 : index
    %98 = memref.load %arg5[%c2_51] : memref<3xf32, #tpu.memory_space<smem>>
    %99 = vector.broadcast %98 : f32 to vector<8x128xf32>
    %100 = arith.addf %97, %99 : vector<8x128xf32>
    %c1_52 = arith.constant 1 : index
    %c2_53 = arith.constant 2 : index
    %101 = memref.load %arg4[%c1_52, %c2_53] : memref<3x3xf32, #tpu.memory_space<smem>>
    %102 = vector.broadcast %101 : f32 to vector<8x128xf32>
    %103 = arith.mulf %45, %102 : vector<8x128xf32>
    %104 = arith.addf %100, %103 : vector<8x128xf32>
    %c2_54 = arith.constant 2 : index
    %c2_55 = arith.constant 2 : index
    %105 = memref.load %arg4[%c2_54, %c2_55] : memref<3x3xf32, #tpu.memory_space<smem>>
    %106 = vector.broadcast %105 : f32 to vector<8x128xf32>
    %107 = arith.mulf %64, %106 : vector<8x128xf32>
    %108 = arith.addf %104, %107 : vector<8x128xf32>
    %109 = math.tanh %108 : vector<8x128xf32>
    %c0_56 = arith.constant 0 : index
    %c0_57 = arith.constant 0 : index
    %110 = memref.load %arg6[%c0_56, %c0_57] : memref<3x3xf32, #tpu.memory_space<smem>>
    %111 = vector.broadcast %110 : f32 to vector<8x128xf32>
    %112 = arith.mulf %79, %111 : vector<8x128xf32>
    %c0_58 = arith.constant 0 : index
    %113 = memref.load %arg7[%c0_58] : memref<3xf32, #tpu.memory_space<smem>>
    %114 = vector.broadcast %113 : f32 to vector<8x128xf32>
    %115 = arith.addf %112, %114 : vector<8x128xf32>
    %c1_59 = arith.constant 1 : index
    %c0_60 = arith.constant 0 : index
    %116 = memref.load %arg6[%c1_59, %c0_60] : memref<3x3xf32, #tpu.memory_space<smem>>
    %117 = vector.broadcast %116 : f32 to vector<8x128xf32>
    %118 = arith.mulf %94, %117 : vector<8x128xf32>
    %119 = arith.addf %115, %118 : vector<8x128xf32>
    %c2_61 = arith.constant 2 : index
    %c0_62 = arith.constant 0 : index
    %120 = memref.load %arg6[%c2_61, %c0_62] : memref<3x3xf32, #tpu.memory_space<smem>>
    %121 = vector.broadcast %120 : f32 to vector<8x128xf32>
    %122 = arith.mulf %109, %121 : vector<8x128xf32>
    %123 = arith.addf %119, %122 : vector<8x128xf32>
    %124 = math.tanh %123 : vector<8x128xf32>
    %c0_63 = arith.constant 0 : index
    %c1_64 = arith.constant 1 : index
    %125 = memref.load %arg6[%c0_63, %c1_64] : memref<3x3xf32, #tpu.memory_space<smem>>
    %126 = vector.broadcast %125 : f32 to vector<8x128xf32>
    %127 = arith.mulf %79, %126 : vector<8x128xf32>
    %c1_65 = arith.constant 1 : index
    %128 = memref.load %arg7[%c1_65] : memref<3xf32, #tpu.memory_space<smem>>
    %129 = vector.broadcast %128 : f32 to vector<8x128xf32>
    %130 = arith.addf %127, %129 : vector<8x128xf32>
    %c1_66 = arith.constant 1 : index
    %c1_67 = arith.constant 1 : index
    %131 = memref.load %arg6[%c1_66, %c1_67] : memref<3x3xf32, #tpu.memory_space<smem>>
    %132 = vector.broadcast %131 : f32 to vector<8x128xf32>
    %133 = arith.mulf %94, %132 : vector<8x128xf32>
    %134 = arith.addf %130, %133 : vector<8x128xf32>
    %c2_68 = arith.constant 2 : index
    %c1_69 = arith.constant 1 : index
    %135 = memref.load %arg6[%c2_68, %c1_69] : memref<3x3xf32, #tpu.memory_space<smem>>
    %136 = vector.broadcast %135 : f32 to vector<8x128xf32>
    %137 = arith.mulf %109, %136 : vector<8x128xf32>
    %138 = arith.addf %134, %137 : vector<8x128xf32>
    %139 = math.tanh %138 : vector<8x128xf32>
    %c0_70 = arith.constant 0 : index
    %c2_71 = arith.constant 2 : index
    %140 = memref.load %arg6[%c0_70, %c2_71] : memref<3x3xf32, #tpu.memory_space<smem>>
    %141 = vector.broadcast %140 : f32 to vector<8x128xf32>
    %142 = arith.mulf %79, %141 : vector<8x128xf32>
    %c2_72 = arith.constant 2 : index
    %143 = memref.load %arg7[%c2_72] : memref<3xf32, #tpu.memory_space<smem>>
    %144 = vector.broadcast %143 : f32 to vector<8x128xf32>
    %145 = arith.addf %142, %144 : vector<8x128xf32>
    %c1_73 = arith.constant 1 : index
    %c2_74 = arith.constant 2 : index
    %146 = memref.load %arg6[%c1_73, %c2_74] : memref<3x3xf32, #tpu.memory_space<smem>>
    %147 = vector.broadcast %146 : f32 to vector<8x128xf32>
    %148 = arith.mulf %94, %147 : vector<8x128xf32>
    %149 = arith.addf %145, %148 : vector<8x128xf32>
    %c2_75 = arith.constant 2 : index
    %c2_76 = arith.constant 2 : index
    %150 = memref.load %arg6[%c2_75, %c2_76] : memref<3x3xf32, #tpu.memory_space<smem>>
    %151 = vector.broadcast %150 : f32 to vector<8x128xf32>
    %152 = arith.mulf %109, %151 : vector<8x128xf32>
    %153 = arith.addf %149, %152 : vector<8x128xf32>
    %154 = math.tanh %153 : vector<8x128xf32>
    %c0_77 = arith.constant 0 : index
    %c0_78 = arith.constant 0 : index
    %c0_79 = arith.constant 0 : index
    %155 = vector.load %arg8[%c0_77, %c0_78, %c0_79] : memref<3x8x128xf32, #tpu.memory_space<vmem>>, vector<1x8x128xf32>
    %156 = vector.shape_cast %155 : vector<1x8x128xf32> to vector<8x128xf32>
    %157 = vector.shape_cast %124 : vector<8x128xf32> to vector<1x8x128xf32>
    tpu.vector_store %arg8[%c0_77, %c0_78, %c0_79], %157 {strides = array<i32>} : memref<3x8x128xf32, #tpu.memory_space<vmem>>, vector<1x8x128xf32>,
    %c1_80 = arith.constant 1 : index
    %c0_81 = arith.constant 0 : index
    %c0_82 = arith.constant 0 : index
    %158 = vector.load %arg8[%c1_80, %c0_81, %c0_82] : memref<3x8x128xf32, #tpu.memory_space<vmem>>, vector<1x8x128xf32>
    %159 = vector.shape_cast %158 : vector<1x8x128xf32> to vector<8x128xf32>
    %160 = vector.shape_cast %139 : vector<8x128xf32> to vector<1x8x128xf32>
    tpu.vector_store %arg8[%c1_80, %c0_81, %c0_82], %160 {strides = array<i32>} : memref<3x8x128xf32, #tpu.memory_space<vmem>>, vector<1x8x128xf32>,
    %c2_83 = arith.constant 2 : index
    %c0_84 = arith.constant 0 : index
    %c0_85 = arith.constant 0 : index
    %161 = vector.load %arg8[%c2_83, %c0_84, %c0_85] : memref<3x8x128xf32, #tpu.memory_space<vmem>>, vector<1x8x128xf32>
    %162 = vector.shape_cast %161 : vector<1x8x128xf32> to vector<8x128xf32>
    %163 = vector.shape_cast %154 : vector<8x128xf32> to vector<1x8x128xf32>
    tpu.vector_store %arg8[%c2_83, %c0_84, %c0_85], %163 {strides = array<i32>} : memref<3x8x128xf32, #tpu.memory_space<vmem>>, vector<1x8x128xf32>,
    return
  }
  func.func @transform_0(%arg0: i32) -> (i32, i32, i32) {
    %c0_i32 = arith.constant 0 : i32
    %c0_i32_0 = arith.constant 0 : i32
    %c0_i32_1 = arith.constant 0 : i32
    return %c0_i32, %arg0, %c0_i32_0 : i32, i32, i32
  }
  func.func @transform_1(%arg0: i32) -> (i32, i32) {
    %c0_i32 = arith.constant 0 : i32
    %c0_i32_0 = arith.constant 0 : i32
    %c0_i32_1 = arith.constant 0 : i32
    return %c0_i32, %c0_i32_0 : i32, i32
  }
  func.func @transform_2(%arg0: i32) -> i32 {
    %c0_i32 = arith.constant 0 : i32
    %c0_i32_0 = arith.constant 0 : i32
    return %c0_i32 : i32
  }
  func.func @transform_3(%arg0: i32) -> (i32, i32) {
    %c0_i32 = arith.constant 0 : i32
    %c0_i32_0 = arith.constant 0 : i32
    %c0_i32_1 = arith.constant 0 : i32
    return %c0_i32, %c0_i32_0 : i32, i32
  }
  func.func @transform_4(%arg0: i32) -> i32 {
    %c0_i32 = arith.constant 0 : i32
    %c0_i32_0 = arith.constant 0 : i32
    return %c0_i32 : i32
  }
  func.func @transform_5(%arg0: i32) -> (i32, i32) {
    %c0_i32 = arith.constant 0 : i32
    %c0_i32_0 = arith.constant 0 : i32
    %c0_i32_1 = arith.constant 0 : i32
    return %c0_i32, %c0_i32_0 : i32, i32
  }
  func.func @transform_6(%arg0: i32) -> i32 {
    %c0_i32 = arith.constant 0 : i32
    %c0_i32_0 = arith.constant 0 : i32
    return %c0_i32 : i32
  }
  func.func @transform_7(%arg0: i32) -> (i32, i32, i32) {
    %c0_i32 = arith.constant 0 : i32
    %c0_i32_0 = arith.constant 0 : i32
    %c0_i32_1 = arith.constant 0 : i32
    return %c0_i32, %arg0, %c0_i32_0 : i32, i32, i32
  }
}

</mosaic_0001>

<llo_original>
// kernel: net_forward.1
$region0: #{net_forward.1}
  #allocation0 [shape = 'u32[]', space=smem, size = 0x4, offset = 0x4, fixed_abs, tag = 'smem constant byte address 0x4 - core index']
  #allocation1 [shape = 'u32[144,128]{1,0:T(1,128)}', space=vmem, size = 0x12000, scoped, tag = 'internal scratch']
  %s0 = inlined_call_operand.vmem [shape: f32[4,8,128], index: 0, kind: input, shape index: {}]
  %s1 = inlined_call_operand.vmem [shape: f32[4,3], index: 1, kind: input, shape index: {}]
  %s2 = inlined_call_operand.vmem [shape: f32[3], index: 2, kind: input, shape index: {}]
  %s3 = inlined_call_operand.vmem [shape: f32[3,3], index: 3, kind: input, shape index: {}]
  %s4 = inlined_call_operand.vmem [shape: f32[3], index: 4, kind: input, shape index: {}]
  %s5 = inlined_call_operand.vmem [shape: f32[3,3], index: 5, kind: input, shape index: {}]
  %s6 = inlined_call_operand.vmem [shape: f32[3], index: 6, kind: input, shape index: {}]
  %s7 = inlined_call_operand.vmem [shape: f32[3,8,128], index: 7, kind: output, shape index: {}]
  %s8 = sld [smem:[#allocation0]]
  $region62: #{net_forward.1} parent=0
    _
  %s10 = ssub.s32 1, %s8
  %s11 = scalar_select 0, %s10, %s8
  $region1: #{net_forward.1} parent=0
    #allocation2 [shape = 'u8[2048]{0}', space=smem, size = 0x800, scoped, tag = 'input window, operand 1, single buffered']
    #allocation3 [shape = 's32[1]{0}', space=sflag, size = 0x4, scoped, tag = 'scoped memory for net_forward.1']
    #allocation4 [shape = 'u8[512]{0}', space=smem, size = 0x200, scoped, tag = 'input window, operand 2, single buffered']
    #allocation5 [shape = 's32[1]{0}', space=sflag, size = 0x4, scoped, tag = 'scoped memory for net_forward.1']
    #allocation6 [shape = 'u8[2048]{0}', space=smem, size = 0x800, scoped, tag = 'input window, operand 3, single buffered']
    #allocation7 [shape = 'u8[512]{0}', space=smem, size = 0x200, scoped, tag = 'input window, operand 4, single buffered']
    #allocation8 [shape = 's32[1]{0}', space=sflag, size = 0x4, scoped, tag = 'scoped memory for net_forward.1']
    #allocation9 [shape = 'u8[2048]{0}', space=smem, size = 0x800, scoped, tag = 'input window, operand 5, single buffered']
    #allocation10 [shape = 'u8[512]{0}', space=smem, size = 0x200, scoped, tag = 'input window, operand 6, single buffered']
    #allocation11 [shape = 's32[1]{0}', space=sflag, size = 0x4, scoped, tag = 'scoped memory for net_forward.1']
    %12 = vsyncpa [#allocation3], 0
    %13 = vsyncpa [#allocation5], 0
    %14 = vsyncpa [#allocation8], 0
    %15 = vsyncpa [#allocation11], 0
    // Predicated region
    $region2: #{net_forward.1} parent=1 // pred_check
      _
    $region3: #{net_forward.1} parent=1 // pred_check_branch
      %17 = sbr.rel (0) target = $region5
    $region4: #{net_forward.1} parent=1 // pred_region
      _
    $region5: #{net_forward.1} parent=1 // pred_fallthru
      _
    // Predicated region
    $region6: #{net_forward.1} parent=1 // pred_check
      _
    $region7: #{net_forward.1} parent=1 // pred_check_branch
      %19 = sbr.rel (0) target = $region9
    $region8: #{net_forward.1} parent=1 // pred_region
      %s21 = ssub.s32 64, 64
      %22 = vsyncadd [#allocation3], %s21
      %s24 = sshll.u32 %s1, 4
      %s25 = int_to_ptr.vmem [resolvable:$true] %s24
      %27 = dma.vmem_to_smem %s25, 64, [#allocation2], [#allocation3]
    $region9: #{net_forward.1} parent=1 // pred_fallthru
      _
    // Predicated region
    $region10: #{net_forward.1} parent=1 // pred_check
      _
    $region11: #{net_forward.1} parent=1 // pred_check_branch
      %29 = sbr.rel (0) target = $region13
    $region12: #{net_forward.1} parent=1 // pred_region
      %s31 = ssub.s32 16, 16
      %32 = vsyncadd [#allocation5], %s31
      %s34 = sshll.u32 %s2, 4
      %s35 = int_to_ptr.vmem [resolvable:$true] %s34
      %37 = dma.vmem_to_smem %s35, 16, [#allocation4], [#allocation5]
    $region13: #{net_forward.1} parent=1 // pred_fallthru
      _
    // Predicated region
    $region14: #{net_forward.1} parent=1 // pred_check
      _
    $region15: #{net_forward.1} parent=1 // pred_check_branch
      %39 = sbr.rel (0) target = $region17
    $region16: #{net_forward.1} parent=1 // pred_region
      %s41 = ssub.s32 64, 64
      %42 = vsyncadd [#allocation5], %s41
      %s44 = sshll.u32 %s3, 4
      %s45 = int_to_ptr.vmem [resolvable:$true] %s44
      %47 = dma.vmem_to_smem %s45, 64, [#allocation6], [#allocation5]
    $region17: #{net_forward.1} parent=1 // pred_fallthru
      _
    // Predicated region
    $region18: #{net_forward.1} parent=1 // pred_check
      _
    $region19: #{net_forward.1} parent=1 // pred_check_branch
      %49 = sbr.rel (0) target = $region21
    $region20: #{net_forward.1} parent=1 // pred_region
      %s51 = ssub.s32 16, 16
      %52 = vsyncadd [#allocation8], %s51
      %s54 = sshll.u32 %s4, 4
      %s55 = int_to_ptr.vmem [resolvable:$true] %s54
      %57 = dma.vmem_to_smem %s55, 16, [#allocation7], [#allocation8]
    $region21: #{net_forward.1} parent=1 // pred_fallthru
      _
    // Predicated region
    $region22: #{net_forward.1} parent=1 // pred_check
      _
    $region23: #{net_forward.1} parent=1 // pred_check_branch
      %59 = sbr.rel (0) target = $region25
    $region24: #{net_forward.1} parent=1 // pred_region
      %s61 = ssub.s32 64, 64
      %62 = vsyncadd [#allocation8], %s61
      %s64 = sshll.u32 %s5, 4
      %s65 = int_to_ptr.vmem [resolvable:$true] %s64
      %67 = dma.vmem_to_smem %s65, 64, [#allocation9], [#allocation8]
    $region25: #{net_forward.1} parent=1 // pred_fallthru
      _
    // Predicated region
    $region26: #{net_forward.1} parent=1 // pred_check
      _
    $region27: #{net_forward.1} parent=1 // pred_check_branch
      %69 = sbr.rel (0) target = $region29
    $region28: #{net_forward.1} parent=1 // pred_region
      %s71 = ssub.s32 16, 16
      %72 = vsyncadd [#allocation11], %s71
      %s74 = sshll.u32 %s6, 4
      %s75 = int_to_ptr.vmem [resolvable:$true] %s74
      %77 = dma.vmem_to_smem %s75, 16, [#allocation10], [#allocation11]
    $region29: #{net_forward.1} parent=1 // pred_fallthru
      _
    // Predicated region
    $region30: #{net_forward.1} parent=1 // pred_check
      _
    $region31: #{net_forward.1} parent=1 // pred_check_branch
      %79 = sbr.rel (0) target = $region33
    $region32: #{net_forward.1} parent=1 // pred_region
      %80 = dma.done [#allocation3], 64
    $region33: #{net_forward.1} parent=1 // pred_fallthru
      _
    // Predicated region
    $region34: #{net_forward.1} parent=1 // pred_check
      _
    $region35: #{net_forward.1} parent=1 // pred_check_branch
      %82 = sbr.rel (0) target = $region37
    $region36: #{net_forward.1} parent=1 // pred_region
      %83 = dma.done [#allocation5], 16
    $region37: #{net_forward.1} parent=1 // pred_fallthru
      _
    // Predicated region
    $region38: #{net_forward.1} parent=1 // pred_check
      _
    $region39: #{net_forward.1} parent=1 // pred_check_branch
      %85 = sbr.rel (0) target = $region41
    $region40: #{net_forward.1} parent=1 // pred_region
      %86 = dma.done [#allocation5], 64
    $region41: #{net_forward.1} parent=1 // pred_fallthru
      _
    // Predicated region
    $region42: #{net_forward.1} parent=1 // pred_check
      _
    $region43: #{net_forward.1} parent=1 // pred_check_branch
      %88 = sbr.rel (0) target = $region45
    $region44: #{net_forward.1} parent=1 // pred_region
      %89 = dma.done [#allocation8], 16
    $region45: #{net_forward.1} parent=1 // pred_fallthru
      _
    // Predicated region
    $region46: #{net_forward.1} parent=1 // pred_check
      _
    $region47: #{net_forward.1} parent=1 // pred_check_branch
      %91 = sbr.rel (0) target = $region49
    $region48: #{net_forward.1} parent=1 // pred_region
      %92 = dma.done [#allocation8], 64
    $region49: #{net_forward.1} parent=1 // pred_fallthru
      _
    // Predicated region
    $region50: #{net_forward.1} parent=1 // pred_check
      _
    $region51: #{net_forward.1} parent=1 // pred_check_branch
      %94 = sbr.rel (0) target = $region53
    $region52: #{net_forward.1} parent=1 // pred_region
      %95 = dma.done [#allocation11], 16
    $region53: #{net_forward.1} parent=1 // pred_fallthru
      _
    %96 = sfence
    %v97 = vld [vmem:[%s0] sm:$0xff]
    %s98 = scalar_lea.vmem %s0, 8
    %v99 = vld [vmem:[%s98] sm:$0xff]
    %s100 = scalar_lea.vmem %s0, 16
    %v101 = vld [vmem:[%s100] sm:$0xff]
    %s102 = scalar_lea.vmem %s0, 24
    %v103 = vld [vmem:[%s102] sm:$0xff]
    %s104 = sld [smem:[#allocation2]]
    %v105 = vstv %s104
    %v106 = vmul.f32 %v97, %v105
    %s107 = sld [smem:[#allocation4]]
    %v108 = vstv %s107
    %v109 = vadd.f32 %v106, %v108
    %s110 = sld [smem:[#allocation2 + $0x80]]
    %v111 = vstv %s110
    %v112 = vmul.f32 %v99, %v111
    %v113 = vadd.f32 %v109, %v112
    %s114 = sld [smem:[#allocation2 + $0x100]]
    %v115 = vstv %s114
    %v116 = vmul.f32 %v101, %v115
    %v117 = vadd.f32 %v113, %v116
    %s118 = sld [smem:[#allocation2 + $0x180]]
    %v119 = vstv %s118
    %v120 = vmul.f32 %v103, %v119
    %v121 = vadd.f32 %v117, %v120
    %v122 = vtanh.pop %v121
    %s123 = sld [smem:[#allocation2 + $0x1]]
    %v124 = vstv %s123
    %v125 = vmul.f32 %v97, %v124
    %s126 = sld [smem:[#allocation4 + $0x1]]
    %v127 = vstv %s126
    %v128 = vadd.f32 %v125, %v127
    %s129 = sld [smem:[#allocation2 + $0x81]]
    %v130 = vstv %s129
    %v131 = vmul.f32 %v99, %v130
    %v132 = vadd.f32 %v128, %v131
    %s133 = sld [smem:[#allocation2 + $0x101]]
    %v134 = vstv %s133
    %v135 = vmul.f32 %v101, %v134
    %v136 = vadd.f32 %v132, %v135
    %s137 = sld [smem:[#allocation2 + $0x181]]
    %v138 = vstv %s137
    %v139 = vmul.f32 %v103, %v138
    %v140 = vadd.f32 %v136, %v139
    %v141 = vtanh.pop %v140
    %s142 = sld [smem:[#allocation2 + $0x2]]
    %v143 = vstv %s142
    %v144 = vmul.f32 %v97, %v143
    %s145 = sld [smem:[#allocation4 + $0x2]]
    %v146 = vstv %s145
    %v147 = vadd.f32 %v144, %v146
    %s148 = sld [smem:[#allocation2 + $0x82]]
    %v149 = vstv %s148
    %v150 = vmul.f32 %v99, %v149
    %v151 = vadd.f32 %v147, %v150
    %s152 = sld [smem:[#allocation2 + $0x102]]
    %v153 = vstv %s152
    %v154 = vmul.f32 %v101, %v153
    %v155 = vadd.f32 %v151, %v154
    %s156 = sld [smem:[#allocation2 + $0x182]]
    %v157 = vstv %s156
    %v158 = vmul.f32 %v103, %v157
    %v159 = vadd.f32 %v155, %v158
    %v160 = vtanh.pop %v159
    %s161 = sld [smem:[#allocation6]]
    %v162 = vstv %s161
    %v163 = vmul.f32 %v122, %v162
    %s164 = sld [smem:[#allocation7]]
    %v165 = vstv %s164
    %v166 = vadd.f32 %v163, %v165
    %s167 = sld [smem:[#allocation6 + $0x80]]
    %v168 = vstv %s167
    %v169 = vmul.f32 %v141, %v168
    %v170 = vadd.f32 %v166, %v169
    %s171 = sld [smem:[#allocation6 + $0x100]]
    %v172 = vstv %s171
    %v173 = vmul.f32 %v160, %v172
    %v174 = vadd.f32 %v170, %v173
    %v175 = vtanh.pop %v174
    %s176 = sld [smem:[#allocation6 + $0x1]]
    %v177 = vstv %s176
    %v178 = vmul.f32 %v122, %v177
    %s179 = sld [smem:[#allocation7 + $0x1]]
    %v180 = vstv %s179
    %v181 = vadd.f32 %v178, %v180
    %s182 = sld [smem:[#allocation6 + $0x81]]
    %v183 = vstv %s182
    %v184 = vmul.f32 %v141, %v183
    %v185 = vadd.f32 %v181, %v184
    %s186 = sld [smem:[#allocation6 + $0x101]]
    %v187 = vstv %s186
    %v188 = vmul.f32 %v160, %v187
    %v189 = vadd.f32 %v185, %v188
    %v190 = vtanh.pop %v189
    %s191 = sld [smem:[#allocation6 + $0x2]]
    %v192 = vstv %s191
    %v193 = vmul.f32 %v122, %v192
    %s194 = sld [smem:[#allocation7 + $0x2]]
    %v195 = vstv %s194
    %v196 = vadd.f32 %v193, %v195
    %s197 = sld [smem:[#allocation6 + $0x82]]
    %v198 = vstv %s197
    %v199 = vmul.f32 %v141, %v198
    %v200 = vadd.f32 %v196, %v199
    %s201 = sld [smem:[#allocation6 + $0x102]]
    %v202 = vstv %s201
    %v203 = vmul.f32 %v160, %v202
    %v204 = vadd.f32 %v200, %v203
    %v205 = vtanh.pop %v204
    %s206 = sld [smem:[#allocation9]]
    %v207 = vstv %s206
    %v208 = vmul.f32 %v175, %v207
    %s209 = sld [smem:[#allocation10]]
    %v210 = vstv %s209
    %v211 = vadd.f32 %v208, %v210
    %s212 = sld [smem:[#allocation9 + $0x80]]
    %v213 = vstv %s212
    %v214 = vmul.f32 %v190, %v213
    %v215 = vadd.f32 %v211, %v214
    %s216 = sld [smem:[#allocation9 + $0x100]]
    %v217 = vstv %s216
    %v218 = vmul.f32 %v205, %v217
    %v219 = vadd.f32 %v215, %v218
    %v220 = vtanh.pop %v219
    %s221 = sld [smem:[#allocation9 + $0x1]]
    %v222 = vstv %s221
    %v223 = vmul.f32 %v175, %v222
    %s224 = sld [smem:[#allocation10 + $0x1]]
    %v225 = vstv %s224
    %v226 = vadd.f32 %v223, %v225
    %s227 = sld [smem:[#allocation9 + $0x81]]
    %v228 = vstv %s227
    %v229 = vmul.f32 %v190, %v228
    %v230 = vadd.f32 %v226, %v229
    %s231 = sld [smem:[#allocation9 + $0x101]]
    %v232 = vstv %s231
    %v233 = vmul.f32 %v205, %v232
    %v234 = vadd.f32 %v230, %v233
    %v235 = vtanh.pop %v234
    %s236 = sld [smem:[#allocation9 + $0x2]]
    %v237 = vstv %s236
    %v238 = vmul.f32 %v175, %v237
    %s239 = sld [smem:[#allocation10 + $0x2]]
    %v240 = vstv %s239
    %v241 = vadd.f32 %v238, %v240
    %s242 = sld [smem:[#allocation9 + $0x82]]
    %v243 = vstv %s242
    %v244 = vmul.f32 %v190, %v243
    %v245 = vadd.f32 %v241, %v244
    %s246 = sld [smem:[#allocation9 + $0x102]]
    %v247 = vstv %s246
    %v248 = vmul.f32 %v205, %v247
    %v249 = vadd.f32 %v245, %v248
    %v250 = vtanh.pop %v249
    %251 = vst [vmem:[%s7] sm:$0xff] %v220
    %s252 = scalar_lea.vmem %s7, 8
    %253 = vst [vmem:[%s252] sm:$0xff] %v235
    %s254 = scalar_lea.vmem %s7, 16
    %255 = vst [vmem:[%s254] sm:$0xff] %v250
    // Predicated region
    $region54: #{net_forward.1} parent=1 // pred_check
      _
    $region55: #{net_forward.1} parent=1 // pred_check_branch
      %257 = sbr.rel (0) target = $region57
    $region56: #{net_forward.1} parent=1 // pred_region
      _
    $region57: #{net_forward.1} parent=1 // pred_fallthru
      _
    // Predicated region
    $region58: #{net_forward.1} parent=1 // pred_check
      _
    $region59: #{net_forward.1} parent=1 // pred_check_branch
      %259 = sbr.rel (0) target = $region61
    $region60: #{net_forward.1} parent=1 // pred_region
      _
    $region61: #{net_forward.1} parent=1 // pred_fallthru
      _
    %260 = vsyncpa [#allocation3], 1
    %261 = vsyncpa [#allocation5], 1
    %262 = vsyncpa [#allocation8], 1
    %263 = vsyncpa [#allocation11], 1

</llo_original>
